<compile_context>
chip_gen: v7x
topology: tpu7x:2x2x1
jax: 0.10.0
libtpu: 0.0.40
codegen_flags: <defaults>
</compile_context>

<pallas_src>
import jax
import jax.numpy as jnp
from jax.experimental import pallas as pl
from jax.experimental.pallas import tpu as pltpu


def _two_layer_kernel(x_ref, w1bd_ref, b1t_ref, wsel_ref, b2_ref, o_ref):
    """One batch tile of the fused two-layer forward pass.

    x_ref:    (TB, S*F)   each row is one flattened (S, F) image
    w1bd_ref: (S*F, SDp)  block-diagonal layer-1 weight (S copies of W1^T)
    b1t_ref:  (1, SDp)    layer-1 bias tiled S times (zero padded)
    wsel_ref: (SDp, Dp)   layer-2 selection matrix with w2 folded in (padded)
    b2_ref:   (1, Dp)     layer-2 scalar bias broadcast over lanes
    o_ref:    (TB, Dp)    lane-dense output tile
    """
    # Layer 1: dense K = S*F contraction on the MXU; result lane (s*D + d).
    h = jnp.dot(x_ref[...], w1bd_ref[...], preferred_element_type=jnp.float32)
    a = jnp.maximum(h + b1t_ref[...], 0.0)                 # bias + ReLU (VPU)
    # Layer 2 after the transpose:  y[t, d] = sum_s w2[s] * a[t, s*D + d]
    y = jnp.dot(a, wsel_ref[...], preferred_element_type=jnp.float32)
    o_ref[...] = (y + b2_ref[...]).astype(o_ref.dtype)


def _pick_tb(batch: int, bytes_per_row: int) -> int:
    """Batch rows per grid step, from an explicit VMEM budget.

    Double-buffered X/out tiles plus fp32 intermediates must stay under
    ~20 MiB (we request a 32 MiB scoped limit, safe on v5e/v6e's 128 MiB and
    v7x's 64 MiB physical VMEM).  Keep >= 2 grid steps for large batches so
    the "parallel" axis shards across v7x's 2 TensorCores, and keep TB a
    multiple of 8 whenever it is not the full batch dimension.
    """
    budget = 20 << 20
    cap = max(8, min(4096, budget // max(bytes_per_row, 1)))
    if batch <= min(cap, 512):
        return batch                       # single grid step; block == full dim
    tb = min(cap, pl.cdiv(batch, 2))       # at least two tiles
    tb -= tb % 8                           # sublane-aligned blocks
    return max(tb, 8)


@jax.jit
def basic_two_layer(x, w1, b1, w2, b2):
    """x: (B, S, F) with S == F == image_size. Mimics the torch module."""
    B, S, F = x.shape
    D = w1.shape[0]
    assert S == F, "transpose(1,2) + layer2 requires the middle dim == image_size"

    SF = S * F
    SD = S * D
    SDp = pl.cdiv(SD, 128) * 128           # packed layer-1 output lanes (>= 128)
    Dp = pl.cdiv(D, 128) * 128             # lane-dense final output width

    f32 = jnp.float32
    # Block-diagonal layer-1 weight: W1bd[s*F + f, s*D + d] = W1[d, f]
    w1bd = jnp.einsum("st,fd->sftd", jnp.eye(S, dtype=f32), w1.astype(f32).T)
    w1bd = jnp.pad(w1bd.reshape(SF, SD), ((0, 0), (0, SDp - SD)))
    # Layer-1 bias tiled over s: b1t[s*D + d] = b1[d]  (padding lanes stay 0)
    b1t = jnp.pad(jnp.tile(b1.astype(f32), S), (0, SDp - SD)).reshape(1, SDp)
    # Layer-2 selection matrix with w2 folded in: Wsel[s*D + d, e] = w2[s]*(d==e)
    wsel = jnp.einsum("s,de->sde", w2.astype(f32).reshape(S), jnp.eye(D, dtype=f32))
    wsel = jnp.pad(wsel.reshape(SD, D), ((0, SDp - SD), (0, Dp - D)))
    # Layer-2 scalar bias broadcast over lanes so it is added in-kernel.
    b2v = jnp.broadcast_to(jnp.asarray(b2, f32).reshape(1, 1), (1, Dp))

    x2 = x.reshape(B, SF)                  # no padded copy of X

    # Double-buffered in/out tiles + (generous) fp32 intermediates per row.
    bytes_per_row = 4 * (2 * SF + 2 * Dp + 3 * SDp)
    TB = _pick_tb(B, bytes_per_row)
    n_tiles = pl.cdiv(B, TB)               # ragged last tile is masked by Pallas

    out = pl.pallas_call(
        _two_layer_kernel,
        out_shape=jax.ShapeDtypeStruct((B, Dp), x.dtype),
        grid_spec=pltpu.PrefetchScalarGridSpec(
            num_scalar_prefetch=0,
            grid=(n_tiles,),
            in_specs=[
                pl.BlockSpec((TB, SF), lambda i: (i, 0)),     # X batch tile
                pl.BlockSpec((SF, SDp), lambda i: (0, 0)),    # block-diag W1
                pl.BlockSpec((1, SDp), lambda i: (0, 0)),     # tiled b1
                pl.BlockSpec((SDp, Dp), lambda i: (0, 0)),    # w2 selection matrix
                pl.BlockSpec((1, Dp), lambda i: (0, 0)),      # b2
            ],
            out_specs=pl.BlockSpec((TB, Dp), lambda i: (i, 0)),
        ),
        compiler_params=pltpu.CompilerParams(
            dimension_semantics=("parallel",),
            vmem_limit_bytes=32 << 20,
        ),
    )(x2, w1bd, b1t, wsel, b2v)

    # Drop padded lanes and mimic torch .squeeze(); fuses under jit.
    return jnp.squeeze(out[:, :D])


def _reference(x, w1, b1, w2, b2):
    hp = jax.lax.Precision.HIGHEST
    out1 = jnp.einsum("bsf,df->bsd", x, w1, precision=hp) + b1
    act = jnp.maximum(out1, 0.0)
    act_t = jnp.transpose(act, (0, 2, 1))                            # (B, D, S)
    y = jnp.einsum("bds,os->bdo", act_t, w2, precision=hp) + b2      # (B, D, 1)
    return jnp.squeeze(y)


if __name__ == "__main__":
    image_size = 16
    num_digits = 8

    key = jax.random.PRNGKey(0)
    kx_a, kx_b, k1, k2, k3, k4 = jax.random.split(key, 6)

    # Deterministic init mimicking nn.Linear default (uniform +-1/sqrt(fan_in)).
    bound1 = 1.0 / jnp.sqrt(image_size)
    w1 = jax.random.uniform(k1, (num_digits, image_size), jnp.float32, -bound1, bound1)
    b1 = jax.random.uniform(k2, (num_digits,), jnp.float32, -bound1, bound1)
    w2 = jax.random.uniform(k3, (1, image_size), jnp.float32, -bound1, bound1)
    b2 = jax.random.uniform(k4, (1,), jnp.float32, -bound1, bound1)

    # batch=2 exercises the single-step path, batch=32 a larger full-dim tile.
    for batch, kx in ((2, kx_a), (32, kx_b)):
        x = jax.random.normal(kx, (batch, image_size, image_size), jnp.float32)
        y = jax.block_until_ready(basic_two_layer(x, w1, b1, w2, b2))
        y_ref = _reference(x, w1, b1, w2, b2)
        assert y.shape == (batch, num_digits), y.shape
        assert jnp.allclose(y, y_ref, atol=1e-5, rtol=1e-5), f"mismatch at batch={batch}"

    print("KERNEL_OK")
</pallas_src>

<mosaic_0001>
module attributes {stable_mosaic.version = 11 : i64} {
  func.func @_two_layer_kernel(%arg0: i32, %arg1: memref<2x256xf32, #tpu.memory_space<vmem>>, %arg2: memref<256x128xf32, #tpu.memory_space<vmem>>, %arg3: memref<1x128xf32, #tpu.memory_space<vmem>>, %arg4: memref<128x128xf32, #tpu.memory_space<vmem>>, %arg5: memref<1x128xf32, #tpu.memory_space<vmem>>, %arg6: memref<2x128xf32, #tpu.memory_space<vmem>>) attributes {dimension_semantics = [#tpu.dimension_semantics<parallel>], iteration_bounds = array<i64: 1>, scalar_prefetch = 0 : i64, scratch_operands = 0 : i64, tpu.core_type = #tpu.core_type<tc>, window_params = [{transform_indices = @transform_0, window_bounds = array<i64: 2, 256>}, {pipeline_mode = #tpu.pipeline_mode<synchronous>, transform_indices = @transform_1, window_bounds = array<i64: 256, 128>}, {pipeline_mode = #tpu.pipeline_mode<synchronous>, transform_indices = @transform_2, window_bounds = array<i64: 1, 128>}, {pipeline_mode = #tpu.pipeline_mode<synchronous>, transform_indices = @transform_3, window_bounds = array<i64: 128, 128>}, {pipeline_mode = #tpu.pipeline_mode<synchronous>, transform_indices = @transform_4, window_bounds = array<i64: 1, 128>}, {transform_indices = @transform_5, window_bounds = array<i64: 2, 128>}]} {
    %c0 = arith.constant 0 : index
    %c0_0 = arith.constant 0 : index
    %0 = vector.load %arg1[%c0, %c0_0] : memref<2x256xf32, #tpu.memory_space<vmem>>, vector<2x256xf32>
    %c0_1 = arith.constant 0 : index
    %c0_2 = arith.constant 0 : index
    %1 = vector.load %arg2[%c0_1, %c0_2] : memref<256x128xf32, #tpu.memory_space<vmem>>, vector<256x128xf32>
    %cst = arith.constant dense<0.000000e+00> : vector<2x128xf32>
    %2 = tpu.matmul %0, %1, %cst {dimension_numbers = #tpu.dot_dimension_numbers<[1], [0], [0], [1], [0, 0, 1, 1], [], []>} : vector<2x256xf32>, vector<256x128xf32>, vector<2x128xf32> -> vector<2x128xf32>
    %c0_3 = arith.constant 0 : index
    %c0_4 = arith.constant 0 : index
    %3 = vector.load %arg3[%c0_3, %c0_4] : memref<1x128xf32, #tpu.memory_space<vmem>>, vector<1x128xf32>
    %4 = vector.broadcast %3 : vector<1x128xf32> to vector<2x128xf32>
    %5 = arith.addf %2, %4 : vector<2x128xf32>
    %cst_5 = arith.constant 0.000000e+00 : f32
    %6 = vector.broadcast %cst_5 : f32 to vector<2x128xf32>
    %7 = arith.maximumf %5, %6 : vector<2x128xf32>
    %c0_6 = arith.constant 0 : index
    %c0_7 = arith.constant 0 : index
    %8 = vector.load %arg4[%c0_6, %c0_7] : memref<128x128xf32, #tpu.memory_space<vmem>>, vector<128x128xf32>
    %cst_8 = arith.constant dense<0.000000e+00> : vector<2x128xf32>
    %9 = tpu.matmul %7, %8, %cst_8 {dimension_numbers = #tpu.dot_dimension_numbers<[1], [0], [0], [1], [0, 0, 1, 1], [], []>} : vector<2x128xf32>, vector<128x128xf32>, vector<2x128xf32> -> vector<2x128xf32>
    %c0_9 = arith.constant 0 : index
    %c0_10 = arith.constant 0 : index
    %10 = vector.load %arg5[%c0_9, %c0_10] : memref<1x128xf32, #tpu.memory_space<vmem>>, vector<1x128xf32>
    %11 = vector.broadcast %10 : vector<1x128xf32> to vector<2x128xf32>
    %12 = arith.addf %9, %11 : vector<2x128xf32>
    %c0_11 = arith.constant 0 : index
    %c0_12 = arith.constant 0 : index
    %13 = vector.load %arg6[%c0_11, %c0_12] : memref<2x128xf32, #tpu.memory_space<vmem>>, vector<2x128xf32>
    tpu.vector_store %arg6[%c0_11, %c0_12], %12 {strides = array<i32>} : memref<2x128xf32, #tpu.memory_space<vmem>>, vector<2x128xf32>,
    return
  }
  func.func @transform_0(%arg0: i32) -> (i32, i32) {
    %c0_i32 = arith.constant 0 : i32
    %c0_i32_0 = arith.constant 0 : i32
    return %arg0, %c0_i32 : i32, i32
  }
  func.func @transform_1(%arg0: i32) -> (i32, i32) {
    %c0_i32 = arith.constant 0 : i32
    %c0_i32_0 = arith.constant 0 : i32
    %c0_i32_1 = arith.constant 0 : i32
    return %c0_i32, %c0_i32_0 : i32, i32
  }
  func.func @transform_2(%arg0: i32) -> (i32, i32) {
    %c0_i32 = arith.constant 0 : i32
    %c0_i32_0 = arith.constant 0 : i32
    %c0_i32_1 = arith.constant 0 : i32
    return %c0_i32, %c0_i32_0 : i32, i32
  }
  func.func @transform_3(%arg0: i32) -> (i32, i32) {
    %c0_i32 = arith.constant 0 : i32
    %c0_i32_0 = arith.constant 0 : i32
    %c0_i32_1 = arith.constant 0 : i32
    return %c0_i32, %c0_i32_0 : i32, i32
  }
  func.func @transform_4(%arg0: i32) -> (i32, i32) {
    %c0_i32 = arith.constant 0 : i32
    %c0_i32_0 = arith.constant 0 : i32
    %c0_i32_1 = arith.constant 0 : i32
    return %c0_i32, %c0_i32_0 : i32, i32
  }
  func.func @transform_5(%arg0: i32) -> (i32, i32) {
    %c0_i32 = arith.constant 0 : i32
    %c0_i32_0 = arith.constant 0 : i32
    return %arg0, %c0_i32 : i32, i32
  }
}

</mosaic_0001>

<llo_original>
// kernel: tile.8
$region0: #{tile.8}
  #allocation0 [shape = 's32[1]{0}', space=sflag, size = 0x4, scoped, tag = 'scoped memory for tile.8']
  %s0 = inlined_call_operand.vmem [shape: f32[8], index: 0, kind: input, shape index: {}]
  %s1 = inlined_call_operand.vmem [shape: f32[16,8], index: 1, kind: output, shape index: {}]
  // Predicated region
  $region2: #{tile.8} parent=0 // pred_check
    _
  $region3: #{tile.8} parent=0 // pred_check_branch
    %3 = sbr.rel (0) target = $region5
  $region4: #{tile.8} parent=0 // pred_region
    _
  $region5: #{tile.8} parent=0 // pred_fallthru
    _
  %v4 = vld [vmem:[%s0] ss:$0 sm:$0xff]
  %5 = vst [vmem:[%s1] sm:$0xff] %v4
  %s6 = scalar_lea.vmem %s1, 8
  %7 = vst [vmem:[%s6] sm:$0xff] %v4

// kernel: basic_two_layer.1
$region0: #{basic_two_layer.1}
  #allocation0 [shape = 'u32[]', space=smem, size = 0x4, offset = 0x4, fixed_abs, tag = 'smem constant byte address 0x4 - core index']
  #allocation1 [shape = 'u32[144,128]{1,0:T(1,128)}', space=vmem, size = 0x12000, scoped, tag = 'internal scratch']
  %s0 = inlined_call_operand.vmem [shape: f32[2,256], index: 0, kind: input, shape index: {}]
  %s1 = inlined_call_operand.vmem [shape: f32[256,128], index: 1, kind: input, shape index: {}]
  %s2 = inlined_call_operand.vmem [shape: f32[1,128], index: 2, kind: input, shape index: {}]
  %s3 = inlined_call_operand.vmem [shape: f32[128,128], index: 3, kind: input, shape index: {}]
  %s4 = inlined_call_operand.vmem [shape: f32[1,128], index: 4, kind: input, shape index: {}]
  %s5 = inlined_call_operand.hbm [shape: f32[2,128], index: 5, kind: output, shape index: {}]
  %s6 = sld [smem:[#allocation0]]
  $region30: #{basic_two_layer.1} parent=0
    _
  %s8 = ssub.s32 1, %s6
  %s9 = scalar_select 0, %s8, %s6
  $region1: #{basic_two_layer.1} parent=0
    #allocation2 [shape = 'u8[1024]{0}', space=vmem, size = 0x400, scoped, tag = 'output window, operand 0, single buffered']
    #allocation3 [shape = 's32[1]{0}', space=sflag, size = 0x4, scoped, tag = 'scoped memory for basic_two_layer.1']
    %10 = vsyncpa [#allocation3], 0
    // Predicated region
    $region2: #{basic_two_layer.1} parent=1 // pred_check
      _
    $region3: #{basic_two_layer.1} parent=1 // pred_check_branch
      %12 = sbr.rel (0) target = $region5
    $region4: #{basic_two_layer.1} parent=1 // pred_region
      _
    $region5: #{basic_two_layer.1} parent=1 // pred_fallthru
      _
    // Predicated region
    $region6: #{basic_two_layer.1} parent=1 // pred_check
      _
    $region7: #{basic_two_layer.1} parent=1 // pred_check_branch
      %14 = sbr.rel (0) target = $region9
    $region8: #{basic_two_layer.1} parent=1 // pred_region
      _
    $region9: #{basic_two_layer.1} parent=1 // pred_fallthru
      _
    // Predicated region
    $region10: #{basic_two_layer.1} parent=1 // pred_check
      _
    $region11: #{basic_two_layer.1} parent=1 // pred_check_branch
      %16 = sbr.rel (0) target = $region13
    $region12: #{basic_two_layer.1} parent=1 // pred_region
      _
    $region13: #{basic_two_layer.1} parent=1 // pred_fallthru
      _
    // Predicated region
    $region14: #{basic_two_layer.1} parent=1 // pred_check
      _
    $region15: #{basic_two_layer.1} parent=1 // pred_check_branch
      %18 = sbr.rel (0) target = $region17
    $region16: #{basic_two_layer.1} parent=1 // pred_region
      _
    $region17: #{basic_two_layer.1} parent=1 // pred_fallthru
      _
    // Predicated region
    $region18: #{basic_two_layer.1} parent=1 // pred_check
      _
    $region19: #{basic_two_layer.1} parent=1 // pred_check_branch
      %20 = sbr.rel (0) target = $region21
    $region20: #{basic_two_layer.1} parent=1 // pred_region
      _
    $region21: #{basic_two_layer.1} parent=1 // pred_fallthru
      _
    %v21 = vld [vmem:[%s0] sm:$0xf]
    %v22 = vld [vmem:[%s1] sm:$0xff]
    %v23 = vld [vmem:[%s1 + $0x8] sm:$0xff]
    %v24 = vld [vmem:[%s1 + $0x10] sm:$0xff]
    %v25 = vld [vmem:[%s1 + $0x18] sm:$0xff]
    %v26 = vld [vmem:[%s1 + $0x20] sm:$0xff]
    %v27 = vld [vmem:[%s1 + $0x28] sm:$0xff]
    %v28 = vld [vmem:[%s1 + $0x30] sm:$0xff]
    %v29 = vld [vmem:[%s1 + $0x38] sm:$0xff]
    %v30 = vld [vmem:[%s1 + $0x40] sm:$0xff]
    %v31 = vld [vmem:[%s1 + $0x48] sm:$0xff]
    %v32 = vld [vmem:[%s1 + $0x50] sm:$0xff]
    %v33 = vld [vmem:[%s1 + $0x58] sm:$0xff]
    %v34 = vld [vmem:[%s1 + $0x60] sm:$0xff]
    %v35 = vld [vmem:[%s1 + $0x68] sm:$0xff]
    %v36 = vld [vmem:[%s1 + $0x70] sm:$0xff]
    %v37 = vld [vmem:[%s1 + $0x78] sm:$0xff]
    %v38 = vld [vmem:[%s1 + $0x80] sm:$0xff]
    %v39 = vld [vmem:[%s1 + $0x88] sm:$0xff]
    %v40 = vld [vmem:[%s1 + $0x90] sm:$0xff]
    %v41 = vld [vmem:[%s1 + $0x98] sm:$0xff]
    %v42 = vld [vmem:[%s1 + $0xa0] sm:$0xff]
    %v43 = vld [vmem:[%s1 + $0xa8] sm:$0xff]
    %v44 = vld [vmem:[%s1 + $0xb0] sm:$0xff]
    %v45 = vld [vmem:[%s1 + $0xb8] sm:$0xff]
    %v46 = vld [vmem:[%s1 + $0xc0] sm:$0xff]
    %v47 = vld [vmem:[%s1 + $0xc8] sm:$0xff]
    %v48 = vld [vmem:[%s1 + $0xd0] sm:$0xff]
    %v49 = vld [vmem:[%s1 + $0xd8] sm:$0xff]
    %v50 = vld [vmem:[%s1 + $0xe0] sm:$0xff]
    %v51 = vld [vmem:[%s1 + $0xe8] sm:$0xff]
    %v52 = vld [vmem:[%s1 + $0xf0] sm:$0xff]
    %v53 = vld [vmem:[%s1 + $0xf8] sm:$0xff]
    %v54 = vld [vmem:[%s2] sm:$0x1]
    %v56 = vlaneseq
    %v57 = vshrl.u32 %v56, 7
    %v58 = vsub.s32 0, %v57
    %v59 = vrot.slane %v54, %v58
    %v63 = vunpack.c.l.s4 1983009808
    %v64 = vunpack.c.0.s8 %v63
    %v65 = vlaneseq
    %v66 = vshrl.u32 %v65, 7
    %v67 = vsub.s32 %v64, %v66
    %v68 = vrot.slane %v21, %v67
    %v69 = vcombine.high %v68, %v68
    %72 = vmatprep.subr.mxu0 0.0
    %73 = vmatpush1.msra.mxu0 %v22
    %74 = vmatprep.subr.mxu0 0.0
    %75 = vmatpush1.msra.mxu0 %v23
    %76 = vmatprep.subr.mxu0 0.0
    %77 = vmatpush1.msra.mxu0 %v24
    %78 = vmatprep.subr.mxu0 0.0
    %79 = vmatpush1.msra.mxu0 %v25
    %80 = vmatprep.subr.mxu0 0.0
    %81 = vmatpush1.msra.mxu0 %v26
    %82 = vmatprep.subr.mxu0 0.0
    %83 = vmatpush1.msra.mxu0 %v27
    %84 = vmatprep.subr.mxu0 0.0
    %85 = vmatpush1.msra.mxu0 %v28
    %86 = vmatprep.subr.mxu0 0.0
    %87 = vmatpush1.msra.mxu0 %v29
    %88 = vmatprep.subr.mxu0 0.0
    %89 = vmatpush1.msra.mxu0 %v30
    %90 = vmatprep.subr.mxu0 0.0
    %91 = vmatpush1.msra.mxu0 %v31
    %92 = vmatprep.subr.mxu0 0.0
    %93 = vmatpush1.msra.mxu0 %v32
    %94 = vmatprep.subr.mxu0 0.0
    %95 = vmatpush1.msra.mxu0 %v33
    %96 = vmatprep.subr.mxu0 0.0
    %97 = vmatpush1.msra.mxu0 %v34
    %98 = vmatprep.subr.mxu0 0.0
    %99 = vmatpush1.msra.mxu0 %v35
    %100 = vmatprep.subr.mxu0 0.0
    %101 = vmatpush1.msra.mxu0 %v36
    %102 = vmatprep.subr.mxu0 0.0
    %103 = vmatpush1.msra.mxu0 %v37
    %104 = vmatprep.subr.mxu0 0.0
    %105 = vmatpush1.msra.mxu0 %v38
    %106 = vmatprep.subr.mxu0 0.0
    %107 = vmatpush1.msra.mxu0 %v39
    %108 = vmatprep.subr.mxu0 0.0
    %109 = vmatpush1.msra.mxu0 %v40
    %110 = vmatprep.subr.mxu0 0.0
    %111 = vmatpush1.msra.mxu0 %v41
    %112 = vmatprep.subr.mxu0 0.0
    %113 = vmatpush1.msra.mxu0 %v42
    %114 = vmatprep.subr.mxu0 0.0
    %115 = vmatpush1.msra.mxu0 %v43
    %116 = vmatprep.subr.mxu0 0.0
    %117 = vmatpush1.msra.mxu0 %v44
    %118 = vmatprep.subr.mxu0 0.0
    %119 = vmatpush1.msra.mxu0 %v45
    %120 = vmatprep.subr.mxu0 0.0
    %121 = vmatpush1.msra.mxu0 %v46
    %122 = vmatprep.subr.mxu0 0.0
    %123 = vmatpush1.msra.mxu0 %v47
    %124 = vmatprep.subr.mxu0 0.0
    %125 = vmatpush1.msra.mxu0 %v48
    %126 = vmatprep.subr.mxu0 0.0
    %127 = vmatpush1.msra.mxu0 %v49
    %128 = vmatprep.subr.mxu0 0.0
    %129 = vmatpush1.msra.mxu0 %v50
    %130 = vmatprep.subr.mxu0 0.0
    %131 = vmatpush1.msra.mxu0 %v51
    %132 = vmatprep.subr.mxu0 0.0
    %133 = vmatpush1.msra.mxu0 %v52
    %134 = vmatprep.subr.mxu0 0.0
    %135 = vmatpush1.msra.mxu0 %v53
    %136 = vmatprep.mubr.f32.mxu0 %v69
    %137 = vmatmul.mubr.f32.gmra.mrb[0].mxu0 %v68
    %v138 = vpop.f32.mrb[0].mxu0
    %v139 = vadd.f32 %v59, %v138
    %v140 = vpop.f32.mrb[0].mxu0
    %141 = vdwg.mxu0
    %v142 = vmax.f32 %v139, 0.0
    %v143 = vld [vmem:[%s3] sm:$0xff]
    %v144 = vld [vmem:[%s3 + $0x8] sm:$0xff]
    %v145 = vld [vmem:[%s3 + $0x10] sm:$0xff]
    %v146 = vld [vmem:[%s3 + $0x18] sm:$0xff]
    %v147 = vld [vmem:[%s3 + $0x20] sm:$0xff]
    %v148 = vld [vmem:[%s3 + $0x28] sm:$0xff]
    %v149 = vld [vmem:[%s3 + $0x30] sm:$0xff]
    %v150 = vld [vmem:[%s3 + $0x38] sm:$0xff]
    %v151 = vld [vmem:[%s3 + $0x40] sm:$0xff]
    %v152 = vld [vmem:[%s3 + $0x48] sm:$0xff]
    %v153 = vld [vmem:[%s3 + $0x50] sm:$0xff]
    %v154 = vld [vmem:[%s3 + $0x58] sm:$0xff]
    %v155 = vld [vmem:[%s3 + $0x60] sm:$0xff]
    %v156 = vld [vmem:[%s3 + $0x68] sm:$0xff]
    %v157 = vld [vmem:[%s3 + $0x70] sm:$0xff]
    %v158 = vld [vmem:[%s3 + $0x78] sm:$0xff]
    %v159 = vld [vmem:[%s4] sm:$0x1]
    %v161 = vlaneseq
    %v162 = vshrl.u32 %v161, 7
    %v163 = vsub.s32 0, %v162
    %v164 = vrot.slane %v159, %v163
    %166 = vmatprep.subr.mxu0 0.0
    %167 = vmatpush1.msra.mxu0 %v143
    %168 = vmatprep.subr.mxu0 0.0
    %169 = vmatpush1.msra.mxu0 %v144
    %170 = vmatprep.subr.mxu0 0.0
    %171 = vmatpush1.msra.mxu0 %v145
    %172 = vmatprep.subr.mxu0 0.0
    %173 = vmatpush1.msra.mxu0 %v146
    %174 = vmatprep.subr.mxu0 0.0
    %175 = vmatpush1.msra.mxu0 %v147
    %176 = vmatprep.subr.mxu0 0.0
    %177 = vmatpush1.msra.mxu0 %v148
    %178 = vmatprep.subr.mxu0 0.0
    %179 = vmatpush1.msra.mxu0 %v149
    %180 = vmatprep.subr.mxu0 0.0
    %181 = vmatpush1.msra.mxu0 %v150
    %182 = vmatprep.subr.mxu0 0.0
    %183 = vmatpush1.msra.mxu0 %v151
    %184 = vmatprep.subr.mxu0 0.0
    %185 = vmatpush1.msra.mxu0 %v152
    %186 = vmatprep.subr.mxu0 0.0
    %187 = vmatpush1.msra.mxu0 %v153
    %188 = vmatprep.subr.mxu0 0.0
    %189 = vmatpush1.msra.mxu0 %v154
    %190 = vmatprep.subr.mxu0 0.0
    %191 = vmatpush1.msra.mxu0 %v155
    %192 = vmatprep.subr.mxu0 0.0
    %193 = vmatpush1.msra.mxu0 %v156
    %194 = vmatprep.subr.mxu0 0.0
    %195 = vmatpush1.msra.mxu0 %v157
    %196 = vmatprep.subr.mxu0 0.0
    %197 = vmatpush1.msra.mxu0 %v158
    %198 = vmatprep.subr.mxu0 0.0
    %199 = vmatpush1.msra.mxu0 0.0
    %200 = vmatprep.subr.mxu0 0.0
    %201 = vmatpush1.msra.mxu0 0.0
    %202 = vmatprep.subr.mxu0 0.0
    %203 = vmatpush1.msra.mxu0 0.0
    %204 = vmatprep.subr.mxu0 0.0
    %205 = vmatpush1.msra.mxu0 0.0
    %206 = vmatprep.subr.mxu0 0.0
    %207 = vmatpush1.msra.mxu0 0.0
    %208 = vmatprep.subr.mxu0 0.0
    %209 = vmatpush1.msra.mxu0 0.0
    %210 = vmatprep.subr.mxu0 0.0
    %211 = vmatpush1.msra.mxu0 0.0
    %212 = vmatprep.subr.mxu0 0.0
    %213 = vmatpush1.msra.mxu0 0.0
    %214 = vmatprep.subr.mxu0 0.0
    %215 = vmatpush1.msra.mxu0 0.0
    %216 = vmatprep.subr.mxu0 0.0
    %217 = vmatpush1.msra.mxu0 0.0
    %218 = vmatprep.subr.mxu0 0.0
    %219 = vmatpush1.msra.mxu0 0.0
    %220 = vmatprep.subr.mxu0 0.0
    %221 = vmatpush1.msra.mxu0 0.0
    %222 = vmatprep.subr.mxu0 0.0
    %223 = vmatpush1.msra.mxu0 0.0
    %224 = vmatprep.subr.mxu0 0.0
    %225 = vmatpush1.msra.mxu0 0.0
    %226 = vmatprep.subr.mxu0 0.0
    %227 = vmatpush1.msra.mxu0 0.0
    %228 = vmatprep.subr.mxu0 0.0
    %229 = vmatpush1.msra.mxu0 0.0
    %230 = vmatprep.mubr.f32.mxu0 0.0
    %231 = vmatmul.mubr.f32.gmra.mrb[0].mxu0 %v142
    %v232 = vpop.f32.mrb[0].mxu0
    %v233 = vadd.f32 %v164, %v232
    %v234 = vpop.f32.mrb[0].mxu0
    %235 = vdwg.mxu0
    %236 = vst [vmem:[#allocation2] sm:$0x3] %v233
    // Predicated region
    $region22: #{basic_two_layer.1} parent=1 // pred_check
      _
    $region23: #{basic_two_layer.1} parent=1 // pred_check_branch
      %238 = sbr.rel (0) target = $region25
    $region24: #{basic_two_layer.1} parent=1 // pred_region
      %s240 = ssub.s32 32, 32
      %241 = vsyncadd [#allocation3], %s240
      %s243 = sshll.u32 [#allocation2], 4
      %s244 = int_to_ptr.vmem [resolvable:$true] %s243
      %246 = dma.vmem_to_hbm [thread:$0]  %s244, 32, %s5, [#allocation3]
    $region25: #{basic_two_layer.1} parent=1 // pred_fallthru
      _
    // Predicated region
    $region26: #{basic_two_layer.1} parent=1 // pred_check
      _
    $region27: #{basic_two_layer.1} parent=1 // pred_check_branch
      %248 = sbr.rel (0) target = $region29
    $region28: #{basic_two_layer.1} parent=1 // pred_region
      %249 = dma.done [#allocation3], 32
    $region29: #{basic_two_layer.1} parent=1 // pred_fallthru
      _
    %250 = vsyncpa [#allocation3], 1

</llo_original>
